<compile_context>
chip_gen: v5e
topology: v5e:2x2
jax: 0.10.0
libtpu: 0.0.40
codegen_flags: <defaults>
</compile_context>

<pallas_src>
import functools

import jax
import jax.numpy as jnp
from jax import lax
from jax.experimental import pallas as pl
from jax.experimental.pallas import tpu as pltpu

H_PAD = 128    # hidden size (64) zero-padded to a full lane width
SUBLANE = 8    # W3 row vector padded to a full sublane tile

# Contract the last dim of both operands (A @ B.T on the MXU, no explicit transpose).
_TRANS_B_DIMS = (((1,), (1,)), ((), ()))


def uvfa_critic_kernel(x_ref, w1_ref, b1_ref, w2_ref, b2_ref, w3t_ref, b3_ref,
                       o_ref, *, neg_horizon):
    # Layer 1: Linear + ReLU (bf16 inputs, f32 accumulation).
    h1 = jnp.dot(x_ref[...], w1_ref[...],
                 preferred_element_type=jnp.float32) + b1_ref[...]
    h1 = jnp.maximum(h1, 0.0)

    # Layer 2: Linear + ReLU.
    h2 = jnp.dot(h1.astype(jnp.bfloat16), w2_ref[...],
                 preferred_element_type=jnp.float32) + b2_ref[...]
    h2 = jnp.maximum(h2, 0.0)

    # Layer 3: lane-dense output row.  w3t is (8, H_PAD) with only row 0 real,
    # so the trans_b matmul yields (8, tb); keep row 0 -> (1, tb) lane-major.
    z8 = lax.dot_general(w3t_ref[...], h2.astype(jnp.bfloat16),
                         dimension_numbers=_TRANS_B_DIMS,
                         preferred_element_type=jnp.float32)
    z = z8[0:1, :] + b3_ref[...]               # (1, tb)
    q = 1.0 / (1.0 + jnp.exp(-z))              # exact sigmoid, only on real row
    o_ref[...] = (neg_horizon * q).astype(o_ref.dtype)


def init_params(key, state_size, action_size, goal_size, hidden):
    """Deterministic init matching nn.Linear's U(-1/sqrt(fan_in), +1/sqrt(fan_in)).

    Weights stored as [in_features, out_features] so forward is x @ W + b.
    """
    in_size = state_size + action_size + goal_size
    keys = jax.random.split(key, 6)

    def lin(kw, kb, fan_in, fan_out):
        bound = 1.0 / jnp.sqrt(fan_in)
        w = jax.random.uniform(kw, (fan_in, fan_out), jnp.float32, -bound, bound)
        b = jax.random.uniform(kb, (1, fan_out), jnp.float32, -bound, bound)
        return w, b

    w1, b1 = lin(keys[0], keys[1], in_size, hidden)
    w2, b2 = lin(keys[2], keys[3], hidden, hidden)
    w3, b3 = lin(keys[4], keys[5], hidden, 1)
    return dict(w1=w1, b1=b1, w2=w2, b2=b2, w3=w3, b3=b3)


def pack_params(p):
    """Pad hidden to 128 lanes, turn W3 into a sublane-padded row, cast weights to bf16."""
    hidden = p["w1"].shape[1]
    assert hidden <= H_PAD, "pack_params assumes hidden_layer_size <= 128"
    bf = jnp.bfloat16

    def pad_cols(x, n=H_PAD):
        return jnp.pad(x, ((0, 0), (0, n - x.shape[1])))

    def pad_rows(x, n=H_PAD):
        return jnp.pad(x, ((0, n - x.shape[0]), (0, 0)))

    w1 = pad_cols(p["w1"]).astype(bf)                            # (K, 128)
    w2 = pad_rows(pad_cols(p["w2"])).astype(bf)                  # (128, 128)
    w3t = pad_cols(pad_rows(p["w3"].T, SUBLANE)).astype(bf)      # (8, 128), row 0 real
    return dict(w1=w1, w2=w2, w3t=w3t,
                b1=pad_cols(p["b1"]), b2=pad_cols(p["b2"]),      # biases stay f32
                b3=p["b3"])                                      # (1, 1) f32


def uvfa_critic_forward(state, action, goal, packed, horizon, *, tb=512):
    assert tb % 128 == 0, "tb must be a multiple of 128 for a lane-dense output row"
    batch = state.shape[0]

    # Fold the concat + bf16 cast into one cheap XLA op (no jnp.pad round trip).
    x = jnp.concatenate([state, action, goal], axis=-1).astype(jnp.bfloat16)
    k_in = x.shape[1]

    num_tiles = pl.cdiv(batch, tb)
    padded_batch = num_tiles * tb

    kernel = functools.partial(uvfa_critic_kernel, neg_horizon=-float(horizon))

    def res_spec(shape):   # VMEM-resident across all grid steps (one-time DMA)
        return pl.BlockSpec(shape, lambda i, _s=shape: (0,) * len(_s))

    out = pl.pallas_call(
        kernel,
        out_shape=jax.ShapeDtypeStruct((1, padded_batch), jnp.float32),
        grid_spec=pltpu.PrefetchScalarGridSpec(
            num_scalar_prefetch=0,
            grid=(num_tiles,),
            in_specs=[
                pl.BlockSpec((tb, k_in), lambda i: (i, 0)),   # streamed activations
                res_spec((k_in, H_PAD)),                      # w1
                res_spec((1, H_PAD)),                         # b1
                res_spec((H_PAD, H_PAD)),                     # w2
                res_spec((1, H_PAD)),                         # b2
                res_spec((SUBLANE, H_PAD)),                   # w3 (row 0 real)
                res_spec((1, 1)),                             # b3
            ],
            out_specs=pl.BlockSpec((1, tb), lambda i: (0, i)),
        ),
        compiler_params=pltpu.CompilerParams(
            dimension_semantics=("parallel",),
            vmem_limit_bytes=32 * 1024 * 1024,
        ),
    )(x, packed["w1"], packed["b1"], packed["w2"], packed["b2"],
      packed["w3t"], packed["b3"])

    # Row 0, first `batch` lanes are the critic scores; boundary-tile garbage is dropped.
    return out[0, :batch].reshape(batch, 1)


def reference_forward(state, action, goal, p, horizon):
    """Pure-JAX reference using the same bf16-input / f32-accumulate matmuls."""
    def bdot(a, w):
        return jnp.dot(a.astype(jnp.bfloat16), w.astype(jnp.bfloat16),
                       preferred_element_type=jnp.float32)

    x = jnp.concatenate([state, action, goal], axis=-1)
    h1 = jnp.maximum(bdot(x, p["w1"]) + p["b1"], 0.0)
    h2 = jnp.maximum(bdot(h1, p["w2"]) + p["b2"], 0.0)
    q = 1.0 / (1.0 + jnp.exp(-(bdot(h2, p["w3"]) + p["b3"])))
    return -float(horizon) * q


if __name__ == "__main__":
    STATE_SIZE, ACTION_SIZE, GOAL_SIZE = 12, 6, 4
    HIDDEN, HORIZON, BATCH = 64, 10, 200   # BATCH not a tile multiple: tests boundary tile

    key = jax.random.PRNGKey(0)
    k_params, k_state, k_action, k_goal = jax.random.split(key, 4)

    params = init_params(k_params, STATE_SIZE, ACTION_SIZE, GOAL_SIZE, HIDDEN)
    packed = pack_params(params)

    state = jax.random.normal(k_state, (BATCH, STATE_SIZE), jnp.float32)
    action = jax.random.normal(k_action, (BATCH, ACTION_SIZE), jnp.float32)
    goal = jax.random.normal(k_goal, (BATCH, GOAL_SIZE), jnp.float32)

    # Small test shapes: use tb=128 so the grid has 2 steps and a partial tile.
    # Production default is tb=512 (sweep 512-4096 per generation).
    out = jax.block_until_ready(
        uvfa_critic_forward(state, action, goal, packed, HORIZON, tb=128))
    ref = jax.block_until_ready(
        reference_forward(state, action, goal, params, HORIZON))

    assert out.shape == (BATCH, 1), out.shape
    max_err = float(jnp.max(jnp.abs(out - ref)))
    assert jnp.allclose(out, ref, atol=2e-3, rtol=2e-3), f"mismatch, max_err={max_err}"
    print("KERNEL_OK")
</pallas_src>

<mosaic_0001>
module attributes {stable_mosaic.version = 11 : i64} {
  func.func @uvfa_critic_kernel(%arg0: i32, %arg1: memref<128x22xbf16, #tpu.memory_space<vmem>>, %arg2: memref<22x128xbf16, #tpu.memory_space<vmem>>, %arg3: memref<1x128xf32, #tpu.memory_space<vmem>>, %arg4: memref<128x128xbf16, #tpu.memory_space<vmem>>, %arg5: memref<1x128xf32, #tpu.memory_space<vmem>>, %arg6: memref<8x128xbf16, #tpu.memory_space<vmem>>, %arg7: memref<1x1xf32, #tpu.memory_space<vmem>>, %arg8: memref<1x128xf32, #tpu.memory_space<vmem>>) attributes {dimension_semantics = [#tpu.dimension_semantics<parallel>], iteration_bounds = array<i64: 2>, scalar_prefetch = 0 : i64, scratch_operands = 0 : i64, tpu.core_type = #tpu.core_type<tc>, window_params = [{transform_indices = @transform_0, window_bounds = array<i64: 128, 22>}, {pipeline_mode = #tpu.pipeline_mode<synchronous>, transform_indices = @transform_1, window_bounds = array<i64: 22, 128>}, {pipeline_mode = #tpu.pipeline_mode<synchronous>, transform_indices = @transform_2, window_bounds = array<i64: 1, 128>}, {pipeline_mode = #tpu.pipeline_mode<synchronous>, transform_indices = @transform_3, window_bounds = array<i64: 128, 128>}, {pipeline_mode = #tpu.pipeline_mode<synchronous>, transform_indices = @transform_4, window_bounds = array<i64: 1, 128>}, {pipeline_mode = #tpu.pipeline_mode<synchronous>, transform_indices = @transform_5, window_bounds = array<i64: 8, 128>}, {pipeline_mode = #tpu.pipeline_mode<synchronous>, transform_indices = @transform_6, window_bounds = array<i64: 1, 1>}, {transform_indices = @transform_7, window_bounds = array<i64: 1, 128>}]} {
    %c0 = arith.constant 0 : index
    %c0_0 = arith.constant 0 : index
    %0 = vector.load %arg1[%c0, %c0_0] : memref<128x22xbf16, #tpu.memory_space<vmem>>, vector<128x22xbf16>
    %c0_1 = arith.constant 0 : index
    %c0_2 = arith.constant 0 : index
    %1 = vector.load %arg2[%c0_1, %c0_2] : memref<22x128xbf16, #tpu.memory_space<vmem>>, vector<22x128xbf16>
    %cst = arith.constant dense<0.000000e+00> : vector<128x128xf32>
    %2 = tpu.matmul %0, %1, %cst {dimension_numbers = #tpu.dot_dimension_numbers<[1], [0], [0], [1], [0, 0, 1, 1], [], []>} : vector<128x22xbf16>, vector<22x128xbf16>, vector<128x128xf32> -> vector<128x128xf32>
    %c0_3 = arith.constant 0 : index
    %c0_4 = arith.constant 0 : index
    %3 = vector.load %arg3[%c0_3, %c0_4] : memref<1x128xf32, #tpu.memory_space<vmem>>, vector<1x128xf32>
    %4 = vector.broadcast %3 : vector<1x128xf32> to vector<128x128xf32>
    %5 = arith.addf %2, %4 : vector<128x128xf32>
    %cst_5 = arith.constant 0.000000e+00 : f32
    %6 = vector.broadcast %cst_5 : f32 to vector<128x128xf32>
    %7 = arith.maximumf %5, %6 : vector<128x128xf32>
    %8 = arith.truncf %7 : vector<128x128xf32> to vector<128x128xbf16>
    %c0_6 = arith.constant 0 : index
    %c0_7 = arith.constant 0 : index
    %9 = vector.load %arg4[%c0_6, %c0_7] : memref<128x128xbf16, #tpu.memory_space<vmem>>, vector<128x128xbf16>
    %cst_8 = arith.constant dense<0.000000e+00> : vector<128x128xf32>
    %10 = tpu.matmul %8, %9, %cst_8 {dimension_numbers = #tpu.dot_dimension_numbers<[1], [0], [0], [1], [0, 0, 1, 1], [], []>} : vector<128x128xbf16>, vector<128x128xbf16>, vector<128x128xf32> -> vector<128x128xf32>
    %c0_9 = arith.constant 0 : index
    %c0_10 = arith.constant 0 : index
    %11 = vector.load %arg5[%c0_9, %c0_10] : memref<1x128xf32, #tpu.memory_space<vmem>>, vector<1x128xf32>
    %12 = vector.broadcast %11 : vector<1x128xf32> to vector<128x128xf32>
    %13 = arith.addf %10, %12 : vector<128x128xf32>
    %cst_11 = arith.constant 0.000000e+00 : f32
    %14 = vector.broadcast %cst_11 : f32 to vector<128x128xf32>
    %15 = arith.maximumf %13, %14 : vector<128x128xf32>
    %c0_12 = arith.constant 0 : index
    %c0_13 = arith.constant 0 : index
    %16 = vector.load %arg6[%c0_12, %c0_13] : memref<8x128xbf16, #tpu.memory_space<vmem>>, vector<8x128xbf16>
    %17 = arith.truncf %15 : vector<128x128xf32> to vector<128x128xbf16>
    %cst_14 = arith.constant dense<0.000000e+00> : vector<8x128xf32>
    %18 = tpu.matmul %16, %17, %cst_14 {dimension_numbers = #tpu.dot_dimension_numbers<[1], [1], [0], [0], [0, 0, 1, 0], [], []>} : vector<8x128xbf16>, vector<128x128xbf16>, vector<8x128xf32> -> vector<8x128xf32>
    %19 = vector.extract_strided_slice %18 {offsets = [0, 0], sizes = [1, 128], strides = [1, 1]} : vector<8x128xf32> to vector<1x128xf32>
    %c0_15 = arith.constant 0 : index
    %c0_16 = arith.constant 0 : index
    %20 = vector.load %arg7[%c0_15, %c0_16] : memref<1x1xf32, #tpu.memory_space<vmem>>, vector<1x1xf32>
    %21 = vector.broadcast %20 : vector<1x1xf32> to vector<1x128xf32>
    %22 = arith.addf %19, %21 : vector<1x128xf32>
    %cst_17 = arith.constant 0.000000e+00 : f32
    %23 = vector.broadcast %cst_17 : f32 to vector<1x128xf32>
    %24 = arith.subf %23, %22 : vector<1x128xf32>
    %25 = math.exp %24 : vector<1x128xf32>
    %cst_18 = arith.constant 1.000000e+00 : f32
    %26 = vector.broadcast %cst_18 : f32 to vector<1x128xf32>
    %27 = arith.addf %26, %25 : vector<1x128xf32>
    %cst_19 = arith.constant 1.000000e+00 : f32
    %28 = vector.broadcast %cst_19 : f32 to vector<1x128xf32>
    %29 = arith.divf %28, %27 : vector<1x128xf32>
    %cst_20 = arith.constant -1.000000e+01 : f32
    %30 = vector.broadcast %cst_20 : f32 to vector<1x128xf32>
    %31 = arith.mulf %30, %29 : vector<1x128xf32>
    %c0_21 = arith.constant 0 : index
    %c0_22 = arith.constant 0 : index
    %32 = vector.load %arg8[%c0_21, %c0_22] : memref<1x128xf32, #tpu.memory_space<vmem>>, vector<1x128xf32>
    tpu.vector_store %arg8[%c0_21, %c0_22], %31 {strides = array<i32>} : memref<1x128xf32, #tpu.memory_space<vmem>>, vector<1x128xf32>,
    return
  }
  func.func @transform_0(%arg0: i32) -> (i32, i32) {
    %c0_i32 = arith.constant 0 : i32
    %c0_i32_0 = arith.constant 0 : i32
    return %arg0, %c0_i32 : i32, i32
  }
  func.func @transform_1(%arg0: i32) -> (i32, i32) {
    %c0_i32 = arith.constant 0 : i32
    %c0_i32_0 = arith.constant 0 : i32
    %c0_i32_1 = arith.constant 0 : i32
    return %c0_i32, %c0_i32_0 : i32, i32
  }
  func.func @transform_2(%arg0: i32) -> (i32, i32) {
    %c0_i32 = arith.constant 0 : i32
    %c0_i32_0 = arith.constant 0 : i32
    %c0_i32_1 = arith.constant 0 : i32
    return %c0_i32, %c0_i32_0 : i32, i32
  }
  func.func @transform_3(%arg0: i32) -> (i32, i32) {
    %c0_i32 = arith.constant 0 : i32
    %c0_i32_0 = arith.constant 0 : i32
    %c0_i32_1 = arith.constant 0 : i32
    return %c0_i32, %c0_i32_0 : i32, i32
  }
  func.func @transform_4(%arg0: i32) -> (i32, i32) {
    %c0_i32 = arith.constant 0 : i32
    %c0_i32_0 = arith.constant 0 : i32
    %c0_i32_1 = arith.constant 0 : i32
    return %c0_i32, %c0_i32_0 : i32, i32
  }
  func.func @transform_5(%arg0: i32) -> (i32, i32) {
    %c0_i32 = arith.constant 0 : i32
    %c0_i32_0 = arith.constant 0 : i32
    %c0_i32_1 = arith.constant 0 : i32
    return %c0_i32, %c0_i32_0 : i32, i32
  }
  func.func @transform_6(%arg0: i32) -> (i32, i32) {
    %c0_i32 = arith.constant 0 : i32
    %c0_i32_0 = arith.constant 0 : i32
    %c0_i32_1 = arith.constant 0 : i32
    return %c0_i32, %c0_i32_0 : i32, i32
  }
  func.func @transform_7(%arg0: i32) -> (i32, i32) {
    %c0_i32 = arith.constant 0 : i32
    %c0_i32_0 = arith.constant 0 : i32
    return %c0_i32, %arg0 : i32, i32
  }
}

</mosaic_0001>

<llo_original>
// kernel: tpu_custom_call.1
$region0: #{tpu_custom_call.1}
  #allocation0 [shape = 'u32[]', space=smem, size = 0x4, offset = 0x4, fixed_abs, tag = 'smem constant byte address 0x4 - core index']
  #allocation1 [shape = 'u32[72,128]{1,0:T(1,128)}', space=vmem, size = 0x9000, scoped, tag = 'internal scratch']
  #allocation2 [shape = 'f32[1,1]{1,0:T(1,128)S(1)}', space=vmem, size = 0x200, scoped, tag = 'scoped memory for tpu_custom_call.1']
  %s0 = inlined_call_operand.vmem [shape: bf16[200,22], index: 0, kind: input, shape index: {}]
  %s1 = inlined_call_operand.vmem [shape: bf16[22,128], index: 1, kind: input, shape index: {}]
  %s2 = inlined_call_operand.vmem [shape: f32[1,128], index: 2, kind: input, shape index: {}]
  %s3 = inlined_call_operand.vmem [shape: bf16[128,128], index: 3, kind: input, shape index: {}]
  %s4 = inlined_call_operand.vmem [shape: f32[1,128], index: 4, kind: input, shape index: {}]
  %s5 = inlined_call_operand.vmem [shape: bf16[8,128], index: 5, kind: input, shape index: {}]
  %s6 = inlined_call_operand.<no memory space> [shape: f32[1,1], index: 6, kind: input, shape index: {}]
  %s7 = inlined_call_operand.hbm [shape: f32[1,256], index: 7, kind: output, shape index: {}]
  %s8 = sld [smem:[#allocation0]]
  $region61: #{tpu_custom_call.1} parent=0
    _
  %s10 = ssub.s32 1, %s8
  %s11 = scalar_select 0, %s10, %s8
  %v12 = vstv %s6
  %13 = vst [vmem:[#allocation2] sm:$0x1] %v12
  $region1: #{tpu_custom_call.1} parent=0
    #allocation3 [shape = 'u8[1024]{0}', space=vmem, size = 0x400, scoped, tag = 'output window, operand 0']
    #allocation4 [shape = 's32[2]{0}', space=sflag, size = 0x8, scoped, tag = 'scoped memory for tpu_custom_call.1']
    %14 = vsyncpa [#allocation4], 0
    %s15 = scalar_lea.sflag [#allocation4], 1
    %16 = vsyncpa %s15, 0
    loop: start=0, step=1, limit=4
    $region2: #{tpu_custom_call.1} parent=1 // loop_pre_header
      _
    $region3: #{tpu_custom_call.1} parent=1 // loop_header
      %s18 = sphi 0, %s22
      %p19 = scmp.ge.s32.totalorder %s18, 4
      %s28 = sphi 0, %s30
      %s31 = sphi 0, %s28
      %s32 = sphi 0, %s31
      %s48 = sphi 0, %s32
      %s52 = sphi 0, %s52
      %s54 = sphi 0, %s52
      %s55 = sphi 0, %s54
      %s69 = sphi 0, %s55
      %s73 = sphi 0, %s73
      %s75 = sphi 0, %s73
      %s76 = sphi 0, %s75
      %s90 = sphi 0, %s76
      %s94 = sphi 0, %s94
      %s96 = sphi 0, %s94
      %s97 = sphi 0, %s96
      %s111 = sphi 0, %s97
      %s115 = sphi 0, %s115
      %s117 = sphi 0, %s115
      %s118 = sphi 0, %s117
      %s132 = sphi 0, %s118
      %s136 = sphi 0, %s136
      %s138 = sphi 0, %s136
      %s139 = sphi 0, %s138
      %s153 = sphi 0, %s139
      %s157 = sphi 0, %s157
      %s159 = sphi 0, %s157
      %s160 = sphi 0, %s159
      %s174 = sphi 0, %s160
      %s180 = sphi 0, %s182
      %s183 = sphi 0, %s180
      %s184 = sphi 0, %s183
      %s200 = sphi 0, %s184
    $region4: #{tpu_custom_call.1} parent=1 // loop_header_branch
      %21 = sbr.rel (%p19) target = $region8
    $region5: #{tpu_custom_call.1} parent=1 // loop_body
      %s23 = ssub.s32 %s18, 1
      %s24 = ssub.s32 %s18, 2
      %s25 = sadd.s32 %s18, 1
      %s26 = ssub.s32 %s18, %s25
      %p27 = scmp.eq.s32.totalorder %s26, 0
      %s29 = sadd.s32 %s28, 1
      %s30 = scalar_select %p27, %s28, %s29
      %p33 = pneg %p27
      %p34 = scmp.eq.s32.totalorder %s18, 1
      %p35 = por %p33, %p34
      %p36 = scmp.ne.s32.totalorder %s28, %s31
      %p37 = scmp.eq.s32.totalorder %s18, 0
      %p38 = por %p36, %p37
      %p39 = scmp.ne.s32.totalorder %s28, %s31
      %p40 = scmp.eq.s32.totalorder %s23, 1
      %p41 = por %p39, %p40
      %p42 = scmp.ne.s32.totalorder %s31, %s32
      %p43 = scmp.eq.s32.totalorder %s23, 0
      %p44 = por %p42, %p43
      %p45 = scmp.ne.s32.totalorder %s31, %s32
      %p46 = scmp.eq.s32.totalorder %s24, 1
      %p47 = por %p45, %p46
      %p49 = scmp.ne.s32.totalorder %s32, %s48
      %p50 = scmp.eq.s32.totalorder %s24, 0
      %p51 = por %p49, %p50
      %s53 = sadd.s32 %s52, 1
      %p56 = scmp.eq.s32.totalorder %s18, 1
      %p57 = scmp.ne.s32.totalorder %s52, %s54
      %p58 = scmp.eq.s32.totalorder %s18, 0
      %p59 = por %p57, %p58
      %p60 = scmp.ne.s32.totalorder %s52, %s54
      %p61 = scmp.eq.s32.totalorder %s23, 1
      %p62 = por %p60, %p61
      %p63 = scmp.ne.s32.totalorder %s54, %s55
      %p64 = scmp.eq.s32.totalorder %s23, 0
      %p65 = por %p63, %p64
      %p66 = scmp.ne.s32.totalorder %s54, %s55
      %p67 = scmp.eq.s32.totalorder %s24, 1
      %p68 = por %p66, %p67
      %p70 = scmp.ne.s32.totalorder %s55, %s69
      %p71 = scmp.eq.s32.totalorder %s24, 0
      %p72 = por %p70, %p71
      %s74 = sadd.s32 %s73, 1
      %p77 = scmp.eq.s32.totalorder %s18, 1
      %p78 = scmp.ne.s32.totalorder %s73, %s75
      %p79 = scmp.eq.s32.totalorder %s18, 0
      %p80 = por %p78, %p79
      %p81 = scmp.ne.s32.totalorder %s73, %s75
      %p82 = scmp.eq.s32.totalorder %s23, 1
      %p83 = por %p81, %p82
      %p84 = scmp.ne.s32.totalorder %s75, %s76
      %p85 = scmp.eq.s32.totalorder %s23, 0
      %p86 = por %p84, %p85
      %p87 = scmp.ne.s32.totalorder %s75, %s76
      %p88 = scmp.eq.s32.totalorder %s24, 1
      %p89 = por %p87, %p88
      %p91 = scmp.ne.s32.totalorder %s76, %s90
      %p92 = scmp.eq.s32.totalorder %s24, 0
      %p93 = por %p91, %p92
      %s95 = sadd.s32 %s94, 1
      %p98 = scmp.eq.s32.totalorder %s18, 1
      %p99 = scmp.ne.s32.totalorder %s94, %s96
      %p100 = scmp.eq.s32.totalorder %s18, 0
      %p101 = por %p99, %p100
      %p102 = scmp.ne.s32.totalorder %s94, %s96
      %p103 = scmp.eq.s32.totalorder %s23, 1
      %p104 = por %p102, %p103
      %p105 = scmp.ne.s32.totalorder %s96, %s97
      %p106 = scmp.eq.s32.totalorder %s23, 0
      %p107 = por %p105, %p106
      %p108 = scmp.ne.s32.totalorder %s96, %s97
      %p109 = scmp.eq.s32.totalorder %s24, 1
      %p110 = por %p108, %p109
      %p112 = scmp.ne.s32.totalorder %s97, %s111
      %p113 = scmp.eq.s32.totalorder %s24, 0
      %p114 = por %p112, %p113
      %s116 = sadd.s32 %s115, 1
      %p119 = scmp.eq.s32.totalorder %s18, 1
      %p120 = scmp.ne.s32.totalorder %s115, %s117
      %p121 = scmp.eq.s32.totalorder %s18, 0
      %p122 = por %p120, %p121
      %p123 = scmp.ne.s32.totalorder %s115, %s117
      %p124 = scmp.eq.s32.totalorder %s23, 1
      %p125 = por %p123, %p124
      %p126 = scmp.ne.s32.totalorder %s117, %s118
      %p127 = scmp.eq.s32.totalorder %s23, 0
      %p128 = por %p126, %p127
      %p129 = scmp.ne.s32.totalorder %s117, %s118
      %p130 = scmp.eq.s32.totalorder %s24, 1
      %p131 = por %p129, %p130
      %p133 = scmp.ne.s32.totalorder %s118, %s132
      %p134 = scmp.eq.s32.totalorder %s24, 0
      %p135 = por %p133, %p134
      %s137 = sadd.s32 %s136, 1
      %p140 = scmp.eq.s32.totalorder %s18, 1
      %p141 = scmp.ne.s32.totalorder %s136, %s138
      %p142 = scmp.eq.s32.totalorder %s18, 0
      %p143 = por %p141, %p142
      %p144 = scmp.ne.s32.totalorder %s136, %s138
      %p145 = scmp.eq.s32.totalorder %s23, 1
      %p146 = por %p144, %p145
      %p147 = scmp.ne.s32.totalorder %s138, %s139
      %p148 = scmp.eq.s32.totalorder %s23, 0
      %p149 = por %p147, %p148
      %p150 = scmp.ne.s32.totalorder %s138, %s139
      %p151 = scmp.eq.s32.totalorder %s24, 1
      %p152 = por %p150, %p151
      %p154 = scmp.ne.s32.totalorder %s139, %s153
      %p155 = scmp.eq.s32.totalorder %s24, 0
      %p156 = por %p154, %p155
      %s158 = sadd.s32 %s157, 1
      %p161 = scmp.eq.s32.totalorder %s18, 1
      %p162 = scmp.ne.s32.totalorder %s157, %s159
      %p163 = scmp.eq.s32.totalorder %s18, 0
      %p164 = por %p162, %p163
      %p165 = scmp.ne.s32.totalorder %s157, %s159
      %p166 = scmp.eq.s32.totalorder %s23, 1
      %p167 = por %p165, %p166
      %p168 = scmp.ne.s32.totalorder %s159, %s160
      %p169 = scmp.eq.s32.totalorder %s23, 0
      %p170 = por %p168, %p169
      %p171 = scmp.ne.s32.totalorder %s159, %s160
      %p172 = scmp.eq.s32.totalorder %s24, 1
      %p173 = por %p171, %p172
      %p175 = scmp.ne.s32.totalorder %s160, %s174
      %p176 = scmp.eq.s32.totalorder %s24, 0
      %p177 = por %p175, %p176
      %s178 = ssub.s32 %s18, %s25
      %p179 = scmp.eq.s32.totalorder %s178, 0
      %s181 = sadd.s32 %s180, 1
      %s182 = scalar_select %p179, %s180, %s181
      %p185 = pneg %p179
      %p186 = scmp.eq.s32.totalorder %s18, 1
      %p187 = por %p185, %p186
      %p188 = scmp.ne.s32.totalorder %s180, %s183
      %p189 = scmp.eq.s32.totalorder %s18, 0
      %p190 = por %p188, %p189
      %p191 = scmp.ne.s32.totalorder %s180, %s183
      %p192 = scmp.eq.s32.totalorder %s23, 1
      %p193 = por %p191, %p192
      %p194 = scmp.ne.s32.totalorder %s183, %s184
      %p195 = scmp.eq.s32.totalorder %s23, 0
      %p196 = por %p194, %p195
      %p197 = scmp.ne.s32.totalorder %s183, %s184
      %p198 = scmp.eq.s32.totalorder %s24, 1
      %p199 = por %p197, %p198
      %p201 = scmp.ne.s32.totalorder %s184, %s200
      %p202 = scmp.eq.s32.totalorder %s24, 0
      %p203 = por %p201, %p202
      %p204 = scmp.le.s32.totalorder 1, %s18
      %p205 = scmp.lt.s32.totalorder %s18, 3
      %p206 = pnand %p204, %p205
      %p207 = pneg %p206
      // Predicated region
      $region9: #{tpu_custom_call.1} parent=5 // pred_check
        _
      $region10: #{tpu_custom_call.1} parent=5 // pred_check_branch
        %209 = sbr.rel (%p206) target = $region12
      $region11: #{tpu_custom_call.1} parent=5 // pred_region
        %s210 = ssub.s32 %s18, 1
        // Predicated region
        $region13: #{tpu_custom_call.1} parent=11 // pred_check
          %p211 = pneg %p65
        $region14: #{tpu_custom_call.1} parent=11 // pred_check_branch
          %213 = sbr.rel (%p211) target = $region16
        $region15: #{tpu_custom_call.1} parent=11 // pred_region
          _
        $region16: #{tpu_custom_call.1} parent=11 // pred_fallthru
          _
        // Predicated region
        $region17: #{tpu_custom_call.1} parent=11 // pred_check
          %p214 = pneg %p86
        $region18: #{tpu_custom_call.1} parent=11 // pred_check_branch
          %216 = sbr.rel (%p214) target = $region20
        $region19: #{tpu_custom_call.1} parent=11 // pred_region
          _
        $region20: #{tpu_custom_call.1} parent=11 // pred_fallthru
          _
        // Predicated region
        $region21: #{tpu_custom_call.1} parent=11 // pred_check
          %p217 = pneg %p107
        $region22: #{tpu_custom_call.1} parent=11 // pred_check_branch
          %219 = sbr.rel (%p217) target = $region24
        $region23: #{tpu_custom_call.1} parent=11 // pred_region
          _
        $region24: #{tpu_custom_call.1} parent=11 // pred_fallthru
          _
        // Predicated region
        $region25: #{tpu_custom_call.1} parent=11 // pred_check
          %p220 = pneg %p128
        $region26: #{tpu_custom_call.1} parent=11 // pred_check_branch
          %222 = sbr.rel (%p220) target = $region28
        $region27: #{tpu_custom_call.1} parent=11 // pred_region
          _
        $region28: #{tpu_custom_call.1} parent=11 // pred_fallthru
          _
        // Predicated region
        $region29: #{tpu_custom_call.1} parent=11 // pred_check
          %p223 = pneg %p149
        $region30: #{tpu_custom_call.1} parent=11 // pred_check_branch
          %225 = sbr.rel (%p223) target = $region32
        $region31: #{tpu_custom_call.1} parent=11 // pred_region
          _
        $region32: #{tpu_custom_call.1} parent=11 // pred_fallthru
          _
        // Predicated region
        $region33: #{tpu_custom_call.1} parent=11 // pred_check
          %p226 = pneg %p170
        $region34: #{tpu_custom_call.1} parent=11 // pred_check_branch
          %228 = sbr.rel (%p226) target = $region36
        $region35: #{tpu_custom_call.1} parent=11 // pred_region
          _
        $region36: #{tpu_custom_call.1} parent=11 // pred_fallthru
          _
      $region12: #{tpu_custom_call.1} parent=5 // pred_fallthru
        _
      %p229 = scmp.lt.s32.totalorder %s18, 2
      // Predicated region
      $region37: #{tpu_custom_call.1} parent=5 // pred_check
        %p230 = pneg %p229
      $region38: #{tpu_custom_call.1} parent=5 // pred_check_branch
        %232 = sbr.rel (%p230) target = $region40
      $region39: #{tpu_custom_call.1} parent=5 // pred_region
        // Predicated region
        $region41: #{tpu_custom_call.1} parent=39 // pred_check
          %p233 = pneg %p38
        $region42: #{tpu_custom_call.1} parent=39 // pred_check_branch
          %235 = sbr.rel (%p233) target = $region44
        $region43: #{tpu_custom_call.1} parent=39 // pred_region
          %s236 = smul.u32 16, %s18
          %s237 = ssub.s32 25, %s236
          %p238 = scmp.lt.s32.totalorder %s237, 16
          %s239 = scalar_select %p238, %s237, 16
          %s240 = smul.u32 4, %s239
          %p241 = scmp.lt.s32.totalorder %s236, 24
          %s242 = scalar_select %p241, %s236, 24
          %s243 = smul.addr %s242, 4
          %s244 = scalar_lea.vmem %s0, %s243
          %s245 = smul.u32 16, %s18
          %s246 = ssub.s32 25, %s245
          %p247 = scmp.lt.s32.totalorder %s246, 16
          %s248 = scalar_select %p247, %s246, 16
          %s249 = smul.u32 4, %s248
        $region44: #{tpu_custom_call.1} parent=39 // pred_fallthru
          _
      $region40: #{tpu_custom_call.1} parent=5 // pred_fallthru
        _
      %p250 = scmp.le.s32.totalorder 1, %s18
      %p251 = scmp.lt.s32.totalorder %s18, 3
      %p252 = pnand %p250, %p251
      %p253 = pneg %p252
      // Predicated region
      $region45: #{tpu_custom_call.1} parent=5 // pred_check
        _
      $region46: #{tpu_custom_call.1} parent=5 // pred_check_branch
        %255 = sbr.rel (%p252) target = $region48
      $region47: #{tpu_custom_call.1} parent=5 // pred_region
        %s256 = ssub.s32 %s18, 1
        %s257 = smul.u32 16, %s23
        %s258 = ssub.s32 25, %s257
        %p259 = scmp.lt.s32.totalorder %s258, 16
        %s260 = scalar_select %p259, %s258, 16
        %s261 = smul.u32 4, %s260
        %p262 = scmp.lt.s32.totalorder %s257, 24
        %s263 = scalar_select %p262, %s257, 24
        %s264 = smul.addr %s263, 4
        %s265 = scalar_lea.vmem %s0, %s264
        %p266 = pneg %p44
        %p267 = pneg %p41
        %p268 = pneg %p65
        %p269 = pneg %p62
        %p270 = pneg %p86
        %p271 = pneg %p83
        %p272 = pneg %p107
        %p273 = pneg %p104
        %p274 = pneg %p128
        %p275 = pneg %p125
        %p276 = pneg %p149
        %p277 = pneg %p146
        %p278 = pneg %p170
        %p279 = pneg %p167
        %p280 = pneg %p196
        %p281 = pneg %p193
        %s282 = sand.u32 %s183, 1
        %s283 = scalar_lea.sflag [#allocation4], %s282
        %s284 = sand.u32 %s183, 1
        %s285 = scalar_lea.vmem [#allocation3], %s284
        %s286 = smul.u32 16, %s23
        %s287 = ssub.s32 25, %s286
        %p288 = scmp.lt.s32.totalorder %s287, 16
        %s289 = scalar_select %p288, %s287, 16
        %s290 = smul.u32 4, %s289
        %p291 = scmp.lt.s32.totalorder %s286, 24
        %s292 = scalar_select %p291, %s286, 24
        %s293 = smul.addr %s292, 4
        %s294 = scalar_lea.vmem %s0, %s293
        %s295 = smul.u32 16, %s23
        %s296 = ssub.s32 25, %s295
        %p297 = scmp.lt.s32.totalorder %s296, 16
        %s298 = scalar_select %p297, %s296, 16
        %s299 = smul.u32 4, %s298
        %v301 = vld [vmem:[%s294] sm:$0xf]
        %v302 = vld [vmem:[%s294 + $0x4] sm:$0xf]
        %v303 = vld [vmem:[%s294 + $0x8] sm:$0xf]
        %v304 = vld [vmem:[%s294 + $0xc] sm:$0xf]
        %v305 = vld [vmem:[%s294 + $0x10] sm:$0xf]
        %v306 = vld [vmem:[%s294 + $0x14] sm:$0xf]
        %v307 = vld [vmem:[%s294 + $0x18] sm:$0xf]
        %v308 = vld [vmem:[%s294 + $0x1c] sm:$0xf]
        %v309 = vld [vmem:[%s294 + $0x20] sm:$0xf]
        %v310 = vld [vmem:[%s294 + $0x24] sm:$0xf]
        %v311 = vld [vmem:[%s294 + $0x28] sm:$0xf]
        %v312 = vld [vmem:[%s294 + $0x2c] sm:$0xf]
        %v313 = vld [vmem:[%s294 + $0x30] sm:$0xf]
        %v314 = vld [vmem:[%s294 + $0x34] sm:$0xf]
        %v315 = vld [vmem:[%s294 + $0x38] sm:$0xf]
        %v316 = vld [vmem:[%s294 + $0x3c] sm:$0xf]
        %v317 = vld [vmem:[%s1] sm:$0xf]
        %v318 = vld [vmem:[%s1 + $0x4] sm:$0xf]
        %v319 = vld [vmem:[%s1 + $0x8] sm:$0x7]
        %v320 = vld [vmem:[%s2] sm:$0x1]
        %v322 = vperm.slane %v320, 0
        %v340 = vunpack.c.l.b16 %v301
        %v341 = vunpack.c.l.b16 %v302
        %v342 = vunpack.c.l.b16 %v303
        %v343 = vunpack.c.l.b16 %v304
        %v344 = vunpack.c.l.b16 %v305
        %v345 = vunpack.c.l.b16 %v306
        %v346 = vunpack.c.l.b16 %v307
        %v347 = vunpack.c.l.b16 %v308
        %v348 = vunpack.c.l.b16 %v309
        %v349 = vunpack.c.l.b16 %v310
        %v350 = vunpack.c.l.b16 %v311
        %v351 = vunpack.c.l.b16 %v312
        %v352 = vunpack.c.l.b16 %v313
        %v353 = vunpack.c.l.b16 %v314
        %v354 = vunpack.c.l.b16 %v315
        %v355 = vunpack.c.l.b16 %v316
        %v356 = vpack.c.b16 %v341, %v340
        %v357 = vpack.c.b16 %v343, %v342
        %v358 = vpack.c.b16 %v345, %v344
        %v359 = vpack.c.b16 %v347, %v346
        %v360 = vpack.c.b16 %v349, %v348
        %v361 = vpack.c.b16 %v351, %v350
        %v362 = vpack.c.b16 %v353, %v352
        %v363 = vpack.c.b16 %v355, %v354
        %v367 = vunpack.c.l.b16 %v317
        %v368 = vunpack.c.l.b16 %v318
        %v369 = vunpack.c.l.b16 %v319
        %v370 = vpack.c.b16 %v368, %v367
        %v371 = vpack.c.b16 %v369, %v369
        %vm373 = vcmask 179200
        %v375 = vsel %vm373, %v356, 0
        %v378 = vsel %vm373, %v357, 0
        %v381 = vsel %vm373, %v358, 0
        %v384 = vsel %vm373, %v359, 0
        %v387 = vsel %vm373, %v360, 0
        %v390 = vsel %vm373, %v361, 0
        %v393 = vsel %vm373, %v362, 0
        %v396 = vsel %vm373, %v363, 0
        %vm398 = vcmask 1042432
        %v400 = vsel %vm398, %v371, 0
        %402 = vmatpush.bf16.msra.mxu0 0
        %403 = vmatpush.bf16.msra.mxu0 0
        %404 = vmatpush.bf16.msra.mxu0 0
        %405 = vmatpush.bf16.msra.mxu0 0
        %406 = vmatpush.bf16.msra.mxu0 0
        %407 = vmatpush.bf16.msra.mxu0 0
        %408 = vmatpush.bf16.msra.mxu0 %v400
        %409 = vmatpush.bf16.msra.mxu0 %v370
        %410 = vmatmul.bf16.gmra.mxu0 %v375
        %v411 = vpop.f32.mrf.mxu0
        %v412 = vadd.f32 %v322, %v411
        %v413 = vpop.f32.mrf.mxu0
        %v414 = vadd.f32 %v322, %v413
        %415 = vmatmul.bf16.gmra.mxu0 %v378
        %v416 = vpop.f32.mrf.mxu0
        %v417 = vadd.f32 %v322, %v416
        %v418 = vpop.f32.mrf.mxu0
        %v419 = vadd.f32 %v322, %v418
        %420 = vmatmul.bf16.gmra.mxu0 %v381
        %v421 = vpop.f32.mrf.mxu0
        %v422 = vadd.f32 %v322, %v421
        %v423 = vpop.f32.mrf.mxu0
        %v424 = vadd.f32 %v322, %v423
        %425 = vmatmul.bf16.gmra.mxu0 %v384
        %v426 = vpop.f32.mrf.mxu0
        %v427 = vadd.f32 %v322, %v426
        %v428 = vpop.f32.mrf.mxu0
        %v429 = vadd.f32 %v322, %v428
        %430 = vmatmul.bf16.gmra.mxu0 %v387
        %v431 = vpop.f32.mrf.mxu0
        %v432 = vadd.f32 %v322, %v431
        %v433 = vpop.f32.mrf.mxu0
        %v434 = vadd.f32 %v322, %v433
        %435 = vmatmul.bf16.gmra.mxu0 %v390
        %v436 = vpop.f32.mrf.mxu0
        %v437 = vadd.f32 %v322, %v436
        %v438 = vpop.f32.mrf.mxu0
        %v439 = vadd.f32 %v322, %v438
        %440 = vmatmul.bf16.gmra.mxu0 %v393
        %v441 = vpop.f32.mrf.mxu0
        %v442 = vadd.f32 %v322, %v441
        %v443 = vpop.f32.mrf.mxu0
        %v444 = vadd.f32 %v322, %v443
        %445 = vmatmul.bf16.gmra.mxu0 %v396
        %v446 = vpop.f32.mrf.mxu0
        %v447 = vadd.f32 %v322, %v446
        %v448 = vpop.f32.mrf.mxu0
        %v449 = vadd.f32 %v322, %v448
        %450 = vdwg.mxu0
        %v451 = vmax.f32 %v412, 0.0
        %v452 = vmax.f32 %v414, 0.0
        %v453 = vmax.f32 %v417, 0.0
        %v454 = vmax.f32 %v419, 0.0
        %v455 = vmax.f32 %v422, 0.0
        %v456 = vmax.f32 %v424, 0.0
        %v457 = vmax.f32 %v427, 0.0
        %v458 = vmax.f32 %v429, 0.0
        %v459 = vmax.f32 %v432, 0.0
        %v460 = vmax.f32 %v434, 0.0
        %v461 = vmax.f32 %v437, 0.0
        %v462 = vmax.f32 %v439, 0.0
        %v463 = vmax.f32 %v442, 0.0
        %v464 = vmax.f32 %v444, 0.0
        %v465 = vmax.f32 %v447, 0.0
        %v466 = vmax.f32 %v449, 0.0
        %v467 = vpack.c.bf16 %v452, %v451
        %v468 = vpack.c.bf16 %v454, %v453
        %v469 = vpack.c.bf16 %v456, %v455
        %v470 = vpack.c.bf16 %v458, %v457
        %v471 = vpack.c.bf16 %v460, %v459
        %v472 = vpack.c.bf16 %v462, %v461
        %v473 = vpack.c.bf16 %v464, %v463
        %v474 = vpack.c.bf16 %v466, %v465
        %v475 = vld [vmem:[%s3] sm:$0xf]
        %v476 = vld [vmem:[%s3 + $0x4] sm:$0xf]
        %v477 = vld [vmem:[%s3 + $0x8] sm:$0xf]
        %v478 = vld [vmem:[%s3 + $0xc] sm:$0xf]
        %v479 = vld [vmem:[%s3 + $0x10] sm:$0xf]
        %v480 = vld [vmem:[%s3 + $0x14] sm:$0xf]
        %v481 = vld [vmem:[%s3 + $0x18] sm:$0xf]
        %v482 = vld [vmem:[%s3 + $0x1c] sm:$0xf]
        %v483 = vld [vmem:[%s3 + $0x20] sm:$0xf]
        %v484 = vld [vmem:[%s3 + $0x24] sm:$0xf]
        %v485 = vld [vmem:[%s3 + $0x28] sm:$0xf]
        %v486 = vld [vmem:[%s3 + $0x2c] sm:$0xf]
        %v487 = vld [vmem:[%s3 + $0x30] sm:$0xf]
        %v488 = vld [vmem:[%s3 + $0x34] sm:$0xf]
        %v489 = vld [vmem:[%s3 + $0x38] sm:$0xf]
        %v490 = vld [vmem:[%s3 + $0x3c] sm:$0xf]
        %v491 = vld [vmem:[%s4] sm:$0x1]
        %v493 = vperm.slane %v491, 0
        %v511 = vunpack.c.l.b16 %v475
        %v512 = vunpack.c.l.b16 %v476
        %v513 = vunpack.c.l.b16 %v477
        %v514 = vunpack.c.l.b16 %v478
        %v515 = vunpack.c.l.b16 %v479
        %v516 = vunpack.c.l.b16 %v480
        %v517 = vunpack.c.l.b16 %v481
        %v518 = vunpack.c.l.b16 %v482
        %v519 = vunpack.c.l.b16 %v483
        %v520 = vunpack.c.l.b16 %v484
        %v521 = vunpack.c.l.b16 %v485
        %v522 = vunpack.c.l.b16 %v486
        %v523 = vunpack.c.l.b16 %v487
        %v524 = vunpack.c.l.b16 %v488
        %v525 = vunpack.c.l.b16 %v489
        %v526 = vunpack.c.l.b16 %v490
        %v527 = vpack.c.b16 %v512, %v511
        %v528 = vpack.c.b16 %v514, %v513
        %v529 = vpack.c.b16 %v516, %v515
        %v530 = vpack.c.b16 %v518, %v517
        %v531 = vpack.c.b16 %v520, %v519
        %v532 = vpack.c.b16 %v522, %v521
        %v533 = vpack.c.b16 %v524, %v523
        %v534 = vpack.c.b16 %v526, %v525
        %543 = vmatpush.bf16.msra.mxu0 %v534
        %544 = vmatpush.bf16.msra.mxu0 %v533
        %545 = vmatpush.bf16.msra.mxu0 %v532
        %546 = vmatpush.bf16.msra.mxu0 %v531
        %547 = vmatpush.bf16.msra.mxu0 %v530
        %548 = vmatpush.bf16.msra.mxu0 %v529
        %549 = vmatpush.bf16.msra.mxu0 %v528
        %550 = vmatpush.bf16.msra.mxu0 %v527
        %551 = vmatmul.bf16.gmra.mxu0 %v467
        %v552 = vpop.f32.mrf.mxu0
        %v553 = vadd.f32 %v493, %v552
        %v554 = vpop.f32.mrf.mxu0
        %v555 = vadd.f32 %v493, %v554
        %556 = vmatmul.bf16.gmra.mxu0 %v468
        %v557 = vpop.f32.mrf.mxu0
        %v558 = vadd.f32 %v493, %v557
        %v559 = vpop.f32.mrf.mxu0
        %v560 = vadd.f32 %v493, %v559
        %561 = vmatmul.bf16.gmra.mxu0 %v469
        %v562 = vpop.f32.mrf.mxu0
        %v563 = vadd.f32 %v493, %v562
        %v564 = vpop.f32.mrf.mxu0
        %v565 = vadd.f32 %v493, %v564
        %566 = vmatmul.bf16.gmra.mxu0 %v470
        %v567 = vpop.f32.mrf.mxu0
        %v568 = vadd.f32 %v493, %v567
        %v569 = vpop.f32.mrf.mxu0
        %v570 = vadd.f32 %v493, %v569
        %571 = vmatmul.bf16.gmra.mxu0 %v471
        %v572 = vpop.f32.mrf.mxu0
        %v573 = vadd.f32 %v493, %v572
        %v574 = vpop.f32.mrf.mxu0
        %v575 = vadd.f32 %v493, %v574
        %576 = vmatmul.bf16.gmra.mxu0 %v472
        %v577 = vpop.f32.mrf.mxu0
        %v578 = vadd.f32 %v493, %v577
        %v579 = vpop.f32.mrf.mxu0
        %v580 = vadd.f32 %v493, %v579
        %581 = vmatmul.bf16.gmra.mxu0 %v473
        %v582 = vpop.f32.mrf.mxu0
        %v583 = vadd.f32 %v493, %v582
        %v584 = vpop.f32.mrf.mxu0
        %v585 = vadd.f32 %v493, %v584
        %586 = vmatmul.bf16.gmra.mxu0 %v474
        %v587 = vpop.f32.mrf.mxu0
        %v588 = vadd.f32 %v493, %v587
        %v589 = vpop.f32.mrf.mxu0
        %v590 = vadd.f32 %v493, %v589
        %591 = vdwg.mxu0
        %v592 = vmax.f32 %v553, 0.0
        %v593 = vmax.f32 %v555, 0.0
        %v594 = vmax.f32 %v558, 0.0
        %v595 = vmax.f32 %v560, 0.0
        %v596 = vmax.f32 %v563, 0.0
        %v597 = vmax.f32 %v565, 0.0
        %v598 = vmax.f32 %v568, 0.0
        %v599 = vmax.f32 %v570, 0.0
        %v600 = vmax.f32 %v573, 0.0
        %v601 = vmax.f32 %v575, 0.0
        %v602 = vmax.f32 %v578, 0.0
        %v603 = vmax.f32 %v580, 0.0
        %v604 = vmax.f32 %v583, 0.0
        %v605 = vmax.f32 %v585, 0.0
        %v606 = vmax.f32 %v588, 0.0
        %v607 = vmax.f32 %v590, 0.0
        %v608 = vld [vmem:[%s5] sm:$0xf]
        %v609 = vpack.c.bf16 %v593, %v592
        %v610 = vpack.c.bf16 %v595, %v594
        %v611 = vpack.c.bf16 %v597, %v596
        %v612 = vpack.c.bf16 %v599, %v598
        %v613 = vpack.c.bf16 %v601, %v600
        %v614 = vpack.c.bf16 %v603, %v602
        %v615 = vpack.c.bf16 %v605, %v604
        %v616 = vpack.c.bf16 %v607, %v606
        %617 = vmatpush.bf16.xpose.msra.mxu0 %v616
        %618 = vmatpush.bf16.xpose.msra.mxu0 %v615
        %619 = vmatpush.bf16.xpose.msra.mxu0 %v614
        %620 = vmatpush.bf16.xpose.msra.mxu0 %v613
        %621 = vmatpush.bf16.xpose.msra.mxu0 %v612
        %622 = vmatpush.bf16.xpose.msra.mxu0 %v611
        %623 = vmatpush.bf16.xpose.msra.mxu0 %v610
        %624 = vmatpush.bf16.xpose.msra.mxu0 %v609
        %625 = vmatmul.bf16.gmra.mxu0 %v608
        %v626 = vpop.f32.mrf.mxu0
        %v627 = vadd.f32 0.0, %v626
        %v628 = vpop.f32.mrf.mxu0
        %629 = vdwg.mxu0
        %v630 = vld [vmem:[#allocation2] sm:$0x1]
        %632 = vset.pattern.permute.xlu0 0
        %633 = vperm.xlu0 %632, %v630
        %v634 = vpop.permute.xlu0 %633
        %v636 = vperm.slane %v634, 0
        %v637 = vadd.f32 %v627, %v636
        %v638 = vsub.f32 0.0, %v637
        %v639 = vmul.f32 %v638, 1.442695
        %v640 = vpow.pop %v639
        %v641 = vadd.f32 %v640, 1.0
        %v642 = vrcp.pop %v641
        %v643 = vmul.f32 %v641, %v642
        %v644 = vsub.f32 1.0, %v643
        %v645 = vmul.f32 %v642, %v644
        %v646 = vadd.f32 %v642, %v645
        %vm647 = vweird.f32 %v641
        %vm648 = vweird.f32 %v642
        %vm649 = vmor %vm647, %vm648
        %v650 = vsel %vm649, %v642, %v646
        %v651 = vand.u32 2147483647, %v641
        %vm652 = vcmp.eq.f32.partialorder %v651, 8.507059e+37
        %v653 = vand.u32 %v641, 2147483648
        %v654 = vor.u32 1.1754944e-38, %v653
        %v655 = vsel %vm652, %v654, %v650
        %v656 = vmul.f32 1.0, %v655
        %v657 = vmul.f32 %v656, -10.0
        %658 = vst [vmem:[%s285] sm:$0x1] %v657
        %s659 = sand.u32 %s183, 1
        %s660 = scalar_lea.sflag [#allocation4], %s659
        %s661 = sand.u32 %s183, 1
        %s662 = scalar_lea.vmem [#allocation3], %s661
        // Predicated region
        $region49: #{tpu_custom_call.1} parent=47 // pred_check
          %p663 = pneg %p193
        $region50: #{tpu_custom_call.1} parent=47 // pred_check_branch
          %665 = sbr.rel (%p663) target = $region52
        $region51: #{tpu_custom_call.1} parent=47 // pred_region
          %667 = vsyncadd %s660, 0
          %s668 = scalar_lea.hbm %s7, %s23
          %s670 = sshll.u32 %s662, 4
          %s671 = int_to_ptr.vmem [resolvable:$true] %s670
          %s672 = sshll.u32 %s668, 4
          %s673 = int_to_ptr.hbm [resolvable:$true] %s672
          %675 = dma.vmem_to_hbm [thread:$0]  %s671, 16, %s673, %s660
        $region52: #{tpu_custom_call.1} parent=47 // pred_fallthru
          _
      $region48: #{tpu_custom_call.1} parent=5 // pred_fallthru
        _
      %p676 = scmp.le.s32.totalorder 2, %s18
      // Predicated region
      $region53: #{tpu_custom_call.1} parent=5 // pred_check
        %p677 = pneg %p676
      $region54: #{tpu_custom_call.1} parent=5 // pred_check_branch
        %679 = sbr.rel (%p677) target = $region56
      $region55: #{tpu_custom_call.1} parent=5 // pred_region
        %s680 = ssub.s32 %s18, 2
        // Predicated region
        $region57: #{tpu_custom_call.1} parent=55 // pred_check
          %p681 = pneg %p199
        $region58: #{tpu_custom_call.1} parent=55 // pred_check_branch
          %683 = sbr.rel (%p681) target = $region60
        $region59: #{tpu_custom_call.1} parent=55 // pred_region
          %s684 = sand.u32 %s184, 1
          %s685 = scalar_lea.sflag [#allocation4], %s684
          %s686 = sand.u32 %s184, 1
          %s687 = scalar_lea.vmem [#allocation3], %s686
          %689 = dma.done %s685, 16
        $region60: #{tpu_custom_call.1} parent=55 // pred_fallthru
          _
      $region56: #{tpu_custom_call.1} parent=5 // pred_fallthru
        _
    $region6: #{tpu_custom_call.1} parent=1 // loop_footer
      %s22 = sadd.s32 1, %s18
    $region7: #{tpu_custom_call.1} parent=1 // loop_footer_branch
      %17 = sbr.rel target = $region3
    $region8: #{tpu_custom_call.1} parent=1 // loop_exit
      _
    %690 = vsyncpa [#allocation4], 1
    %s691 = scalar_lea.sflag [#allocation4], 1
    %692 = vsyncpa %s691, 1

</llo_original>
